<compile_context>
chip_gen: v7x
topology: tpu7x:2x2x1
jax: 0.10.0
libtpu: 0.0.40
codegen_flags: <defaults>
</compile_context>

<pallas_src>
import functools

import jax
import jax.numpy as jnp
from jax import lax
from jax.experimental import pallas as pl
from jax.experimental.pallas import tpu as pltpu

EPS = 1e-5          # nn.BatchNorm2d default eps
NEG_SLOPE = 0.01    # nn.LeakyReLU default negative_slope


# --------------------------------- kernel --------------------------------- #
def _down_kernel(x_ref, dw1w_ref, dw1b_ref, pw1w_ref, pw1b_ref,
                 dw2w_ref, dw2b_ref, pw2w_ref, pw2b_ref, o_ref, *, hp, wp, g):
    n = hp * wp            # pooled pixels per image
    gn = g * n             # valid lanes (g images packed side by side)
    n_lanes = o_ref.shape[-1]

    # ---- per-image row/col edge masks, built once from an iota (no DMA) ------
    l = lax.broadcasted_iota(jnp.int32, (1, n_lanes), 1)
    if (n & (n - 1)) == 0 and (wp & (wp - 1)) == 0:
        s = jnp.bitwise_and(l, n - 1)
        col = jnp.bitwise_and(s, wp - 1)
        row = jnp.right_shift(s, wp.bit_length() - 1)
    else:
        # TODO(synk): vector int div/mod fallback for non-power-of-two spatial sizes.
        s = l % n
        col = s % wp
        row = s // wp

    # Horizontal validity is applied to the *source* lanes (pre-masked copies are
    # rolled); vertical validity is applied to the destination, once per dy-group.
    hz_p = col >= 1                    # source-col mask for dx = +1 taps
    hz_m = col <= wp - 2               # source-col mask for dx = -1 taps
    if n_lanes != gn:
        # Keep lane-padding junk from wrapping into valid lanes via the rolls.
        valid = l < gn
        hz_p = jnp.logical_and(hz_p, valid)
        hz_m = jnp.logical_and(hz_m, valid)
    hz_p = hz_p.astype(jnp.float32)
    hz_m = hz_m.astype(jnp.float32)
    vt_p = (row <= hp - 2).astype(jnp.float32)   # dest mask for dy = +1 taps
    vt_m = (row >= 1).astype(jnp.float32)        # dest mask for dy = -1 taps

    def depthwise3x3(v, w_ref, b_ref):
        # v: (C, N); w_ref: (C, 9) with tap = (dy+1)*3 + (dx+1); b_ref: (C, 1).
        # Invariant: every unmasked destination's source index stays inside the
        # same image's valid lane range, so roll wrap-around only feeds masked
        # (zeroed) contributions.  (Holds for 3x3, stride 1, img-major packing.)
        w = w_ref[...]
        vP = v * hz_p                  # sources feeding dx = +1 taps
        vM = v * hz_m                  # sources feeding dx = -1 taps
        # dy == 0
        acc = v * w[:, 4:5] + b_ref[...]
        acc = acc + pltpu.roll(vP, shift=(-1) % n_lanes, axis=1) * w[:, 5:6]
        acc = acc + pltpu.roll(vM, shift=1, axis=1) * w[:, 3:4]
        # dy == +1 (source row = dest row + 1); vertical mask hoisted per group.
        up = (pltpu.roll(v,  shift=(-wp) % n_lanes,        axis=1) * w[:, 7:8]
              + pltpu.roll(vP, shift=(-(wp + 1)) % n_lanes, axis=1) * w[:, 8:9]
              + pltpu.roll(vM, shift=(-(wp - 1)) % n_lanes, axis=1) * w[:, 6:7])
        acc = acc + up * vt_p
        # dy == -1 (source row = dest row - 1)
        dn = (pltpu.roll(v,  shift=wp,     axis=1) * w[:, 1:2]
              + pltpu.roll(vP, shift=wp - 1, axis=1) * w[:, 2:3]
              + pltpu.roll(vM, shift=wp + 1, axis=1) * w[:, 0:1])
        acc = acc + dn * vt_m
        return acc

    def pointwise(h, w_ref, b_ref):
        # h: (K, N); w_ref: (Cout, K); b_ref: (Cout, 1).
        k_dim = h.shape[0]
        if k_dim >= 32:
            # MXU path for real channel counts: bf16 operands, f32 accumulation
            # (single-pass MXU issue on v6e/v7x; documented precision choice).
            return (jnp.dot(w_ref[...].astype(jnp.bfloat16),
                            h.astype(jnp.bfloat16),
                            preferred_element_type=jnp.float32) + b_ref[...])
        # Tiny-K path: VPU broadcast-MAC (K multiply-adds over a (Cout, N) tile);
        # keeps everything in the VPU pipeline, no MXU result drain.
        w = w_ref[...]
        acc = w[:, 0:1] * h[0:1, :] + b_ref[...]
        for k in range(1, k_dim):
            acc = acc + w[:, k:k + 1] * h[k:k + 1, :]
        return acc

    def leaky(y):
        return jnp.maximum(y, NEG_SLOPE * y)

    # ---- MaxPool2d(2): elementwise max over the 4 pre-grouped window slabs ----
    v = jnp.maximum(jnp.maximum(x_ref[0, 0], x_ref[0, 1]),
                    jnp.maximum(x_ref[0, 2], x_ref[0, 3]))        # (cin, N)

    # ---- dwise1 -> pwise1 (BN1 folded) -> LeakyReLU ----
    v = leaky(pointwise(depthwise3x3(v, dw1w_ref, dw1b_ref), pw1w_ref, pw1b_ref))
    # ---- dwise2 -> pwise2 (BN2 folded) -> LeakyReLU ----
    v = leaky(pointwise(depthwise3x3(v, dw2w_ref, dw2b_ref), pw2w_ref, pw2b_ref))

    o_ref[0] = v.astype(o_ref.dtype)


# -------------------------------- wrapper ---------------------------------- #
def down_forward(x_nchw, kp):
    B, cin, H, W = x_nchw.shape
    hp, wp = H // 2, W // 2
    n = hp * wp
    cmid = kp["pw1_w"].shape[0]
    cout = kp["pw2_w"].shape[0]

    # Pack `g` images per grid step so the lane axis (g*n) fills 128-lane vregs.
    g = 1
    if n < 128:
        g = min(B, max(1, 128 // n))
        while B % g != 0:
            g -= 1
    n_lanes = ((g * n + 127) // 128) * 128
    bg = B // g

    # Window-grouped, batch-packed, channel-major layout:
    #   xg[b, wy*2+wx, c, img*n + r*wp + q] = x[b*g+img, c, 2r+wy, 2q+wx]
    # TODO(synk): fold this window gather into the kernel (manual strided DMA from
    # the raw NCHW block) to drop the extra HBM pass for large inputs; under jit
    # XLA at least fuses it with the producer / pad.
    xg = (x_nchw.reshape(bg, g, cin, hp, 2, wp, 2)
          .transpose(0, 4, 6, 2, 1, 3, 5)
          .reshape(bg, 4, cin, g * n))
    if n_lanes != g * n:
        xg = jnp.pad(xg, ((0, 0), (0, 0), (0, 0), (0, n_lanes - g * n)))

    def bcast_spec(shape):
        zeros = (0,) * len(shape)
        return pl.BlockSpec(shape, lambda b, z=zeros: z)

    grid_spec = pltpu.PrefetchScalarGridSpec(
        num_scalar_prefetch=0,
        grid=(bg,),
        in_specs=[
            pl.BlockSpec((1, 4, cin, n_lanes), lambda b: (b, 0, 0, 0)),
            bcast_spec((cin, 9)), bcast_spec((cin, 1)),
            bcast_spec((cmid, cin)), bcast_spec((cmid, 1)),
            bcast_spec((cmid, 9)), bcast_spec((cmid, 1)),
            bcast_spec((cout, cmid)), bcast_spec((cout, 1)),
        ],
        out_specs=pl.BlockSpec((1, cout, n_lanes), lambda b: (b, 0, 0)),
    )

    out = pl.pallas_call(
        functools.partial(_down_kernel, hp=hp, wp=wp, g=g),
        out_shape=jax.ShapeDtypeStruct((bg, cout, n_lanes), jnp.float32),
        grid_spec=grid_spec,
        compiler_params=pltpu.CompilerParams(
            dimension_semantics=("parallel",)),
    )(xg,
      kp["dw1_w"], kp["dw1_b"], kp["pw1_w"], kp["pw1_b"],
      kp["dw2_w"], kp["dw2_b"], kp["pw2_w"], kp["pw2_b"])

    # Un-pack the lane axis back to NCHW (tiny; fused under jit).
    out = out[..., :g * n]
    return (out.reshape(bg, cout, g, n)
               .transpose(0, 2, 1, 3)
               .reshape(B, cout, hp, wp))


# -------------------------- parameters (deterministic) --------------------- #
def init_params(key, cin, cout):
    cmid = cout  # DoubleConv default: mid_channels = out_channels
    ks = jax.random.split(key, 16)
    p = {
        "dw1_w": 0.3 * jax.random.normal(ks[0], (cin, 1, 3, 3), jnp.float32),
        "dw1_b": 0.1 * jax.random.normal(ks[1], (cin,), jnp.float32),
        "pw1_w": 0.3 * jax.random.normal(ks[2], (cmid, cin, 1, 1), jnp.float32),
        "pw1_b": 0.1 * jax.random.normal(ks[3], (cmid,), jnp.float32),
        "bn1_gamma": 1.0 + 0.1 * jax.random.normal(ks[4], (cmid,), jnp.float32),
        "bn1_beta": 0.1 * jax.random.normal(ks[5], (cmid,), jnp.float32),
        "bn1_mean": 0.1 * jax.random.normal(ks[6], (cmid,), jnp.float32),
        "bn1_var": 1.0 + 0.1 * jnp.abs(jax.random.normal(ks[7], (cmid,), jnp.float32)),
        "dw2_w": 0.3 * jax.random.normal(ks[8], (cmid, 1, 3, 3), jnp.float32),
        "dw2_b": 0.1 * jax.random.normal(ks[9], (cmid,), jnp.float32),
        "pw2_w": 0.3 * jax.random.normal(ks[10], (cout, cmid, 1, 1), jnp.float32),
        "pw2_b": 0.1 * jax.random.normal(ks[11], (cout,), jnp.float32),
        "bn2_gamma": 1.0 + 0.1 * jax.random.normal(ks[12], (cout,), jnp.float32),
        "bn2_beta": 0.1 * jax.random.normal(ks[13], (cout,), jnp.float32),
        "bn2_mean": 0.1 * jax.random.normal(ks[14], (cout,), jnp.float32),
        "bn2_var": 1.0 + 0.1 * jnp.abs(jax.random.normal(ks[15], (cout,), jnp.float32)),
    }
    return p


def to_kernel_params(p):
    """Kernel-layout params.  BatchNorm (eval form) folded into the pointwise
    weights/biases: y = s*(Wx + b) + t  ==  (s[:,None]*W) x + (s*b + t)."""
    def bn_fold(g, b, m, v):
        s = g / jnp.sqrt(v + EPS)
        return s, b - m * s

    s1, t1 = bn_fold(p["bn1_gamma"], p["bn1_beta"], p["bn1_mean"], p["bn1_var"])
    s2, t2 = bn_fold(p["bn2_gamma"], p["bn2_beta"], p["bn2_mean"], p["bn2_var"])

    cin = p["dw1_w"].shape[0]
    cmid = p["dw2_w"].shape[0]
    kp = {
        # depthwise: (C, 9) with tap = ky*3 + kx
        "dw1_w": p["dw1_w"][:, 0].reshape(cin, 9),
        "dw1_b": p["dw1_b"].reshape(-1, 1),
        "dw2_w": p["dw2_w"][:, 0].reshape(cmid, 9),
        "dw2_b": p["dw2_b"].reshape(-1, 1),
        # pointwise with BN folded: (Cout, Cin) so out = W @ h
        "pw1_w": p["pw1_w"][:, :, 0, 0] * s1[:, None],
        "pw1_b": (p["pw1_b"] * s1 + t1).reshape(-1, 1),
        "pw2_w": p["pw2_w"][:, :, 0, 0] * s2[:, None],
        "pw2_b": (p["pw2_b"] * s2 + t2).reshape(-1, 1),
    }
    return kp


# ----------------------------- pure-JAX reference -------------------------- #
def ref_forward(x, p):
    dn = ("NCHW", "OIHW", "NCHW")
    prec = lax.Precision.HIGHEST

    def bn_relu(y, g, b, m, v):
        s = g / jnp.sqrt(v + EPS)
        y = y * s.reshape(1, -1, 1, 1) + (b - m * s).reshape(1, -1, 1, 1)
        return jnp.where(y >= 0, y, NEG_SLOPE * y)

    cin = x.shape[1]
    cmid = p["pw1_w"].shape[0]
    y = lax.reduce_window(x, -jnp.inf, lax.max, (1, 1, 2, 2), (1, 1, 2, 2), "VALID")
    y = lax.conv_general_dilated(y, p["dw1_w"], (1, 1), ((1, 1), (1, 1)),
                                 dimension_numbers=dn, feature_group_count=cin,
                                 precision=prec) + p["dw1_b"].reshape(1, -1, 1, 1)
    y = lax.conv_general_dilated(y, p["pw1_w"], (1, 1), ((0, 0), (0, 0)),
                                 dimension_numbers=dn, precision=prec) + p["pw1_b"].reshape(1, -1, 1, 1)
    y = bn_relu(y, p["bn1_gamma"], p["bn1_beta"], p["bn1_mean"], p["bn1_var"])
    y = lax.conv_general_dilated(y, p["dw2_w"], (1, 1), ((1, 1), (1, 1)),
                                 dimension_numbers=dn, feature_group_count=cmid,
                                 precision=prec) + p["dw2_b"].reshape(1, -1, 1, 1)
    y = lax.conv_general_dilated(y, p["pw2_w"], (1, 1), ((0, 0), (0, 0)),
                                 dimension_numbers=dn, precision=prec) + p["pw2_b"].reshape(1, -1, 1, 1)
    y = bn_relu(y, p["bn2_gamma"], p["bn2_beta"], p["bn2_mean"], p["bn2_var"])
    return y


# ----------------------------------- main ----------------------------------- #
if __name__ == "__main__":
    B, Cin, H, W = 2, 4, 16, 16
    Cout = 8

    key = jax.random.PRNGKey(0)
    kx, kparams_key = jax.random.split(key)
    x = jax.random.normal(kx, (B, Cin, H, W), jnp.float32)

    params = init_params(kparams_key, Cin, Cout)
    kparams = to_kernel_params(params)

    out = jax.jit(down_forward)(x, kparams)
    out = jax.block_until_ready(out)

    ref = ref_forward(x, params)
    assert out.shape == (B, Cout, H // 2, W // 2), out.shape
    err = float(jnp.max(jnp.abs(out - ref)))
    assert err < 2e-2, f"max abs err {err}"
    print("KERNEL_OK")
</pallas_src>

<mosaic_0001>
module attributes {stable_mosaic.version = 11 : i64} {
  func.func @_down_kernel(%arg0: i32, %arg1: memref<1x4x4x128xf32, #tpu.memory_space<vmem>>, %arg2: memref<4x9xf32, #tpu.memory_space<vmem>>, %arg3: memref<4x1xf32, #tpu.memory_space<vmem>>, %arg4: memref<8x4xf32, #tpu.memory_space<vmem>>, %arg5: memref<8x1xf32, #tpu.memory_space<vmem>>, %arg6: memref<8x9xf32, #tpu.memory_space<vmem>>, %arg7: memref<8x1xf32, #tpu.memory_space<vmem>>, %arg8: memref<8x8xf32, #tpu.memory_space<vmem>>, %arg9: memref<8x1xf32, #tpu.memory_space<vmem>>, %arg10: memref<1x8x128xf32, #tpu.memory_space<vmem>>) attributes {dimension_semantics = [#tpu.dimension_semantics<parallel>], iteration_bounds = array<i64: 1>, scalar_prefetch = 0 : i64, scratch_operands = 0 : i64, tpu.core_type = #tpu.core_type<tc>, window_params = [{transform_indices = @transform_0, window_bounds = array<i64: 1, 4, 4, 128>}, {pipeline_mode = #tpu.pipeline_mode<synchronous>, transform_indices = @transform_1, window_bounds = array<i64: 4, 9>}, {pipeline_mode = #tpu.pipeline_mode<synchronous>, transform_indices = @transform_2, window_bounds = array<i64: 4, 1>}, {pipeline_mode = #tpu.pipeline_mode<synchronous>, transform_indices = @transform_3, window_bounds = array<i64: 8, 4>}, {pipeline_mode = #tpu.pipeline_mode<synchronous>, transform_indices = @transform_4, window_bounds = array<i64: 8, 1>}, {pipeline_mode = #tpu.pipeline_mode<synchronous>, transform_indices = @transform_5, window_bounds = array<i64: 8, 9>}, {pipeline_mode = #tpu.pipeline_mode<synchronous>, transform_indices = @transform_6, window_bounds = array<i64: 8, 1>}, {pipeline_mode = #tpu.pipeline_mode<synchronous>, transform_indices = @transform_7, window_bounds = array<i64: 8, 8>}, {pipeline_mode = #tpu.pipeline_mode<synchronous>, transform_indices = @transform_8, window_bounds = array<i64: 8, 1>}, {transform_indices = @transform_9, window_bounds = array<i64: 1, 8, 128>}]} {
    %0 = tpu.iota {dimensions = array<i32: 1>} : vector<1x128xi32>
    %c63_i32 = arith.constant 63 : i32
    %1 = vector.broadcast %c63_i32 : i32 to vector<1x128xi32>
    %2 = arith.andi %0, %1 : vector<1x128xi32>
    %c7_i32 = arith.constant 7 : i32
    %3 = vector.broadcast %c7_i32 : i32 to vector<1x128xi32>
    %4 = arith.andi %2, %3 : vector<1x128xi32>
    %c3_i32 = arith.constant 3 : i32
    %5 = vector.broadcast %c3_i32 : i32 to vector<1x128xi32>
    %6 = arith.shrsi %2, %5 : vector<1x128xi32>
    %c1_i32 = arith.constant 1 : i32
    %7 = vector.broadcast %c1_i32 : i32 to vector<1x128xi32>
    %8 = arith.cmpi sge, %4, %7 : vector<1x128xi32>
    %c6_i32 = arith.constant 6 : i32
    %9 = vector.broadcast %c6_i32 : i32 to vector<1x128xi32>
    %10 = arith.cmpi sle, %4, %9 : vector<1x128xi32>
    %11 = arith.extui %8 : vector<1x128xi1> to vector<1x128xi32>
    %12 = arith.sitofp %11 : vector<1x128xi32> to vector<1x128xf32>
    %13 = arith.extui %10 : vector<1x128xi1> to vector<1x128xi32>
    %14 = arith.sitofp %13 : vector<1x128xi32> to vector<1x128xf32>
    %c6_i32_0 = arith.constant 6 : i32
    %15 = vector.broadcast %c6_i32_0 : i32 to vector<1x128xi32>
    %16 = arith.cmpi sle, %6, %15 : vector<1x128xi32>
    %17 = arith.extui %16 : vector<1x128xi1> to vector<1x128xi32>
    %18 = arith.sitofp %17 : vector<1x128xi32> to vector<1x128xf32>
    %c1_i32_1 = arith.constant 1 : i32
    %19 = vector.broadcast %c1_i32_1 : i32 to vector<1x128xi32>
    %20 = arith.cmpi sge, %6, %19 : vector<1x128xi32>
    %21 = arith.extui %20 : vector<1x128xi1> to vector<1x128xi32>
    %22 = arith.sitofp %21 : vector<1x128xi32> to vector<1x128xf32>
    %c0 = arith.constant 0 : index
    %c0_2 = arith.constant 0 : index
    %c0_3 = arith.constant 0 : index
    %c0_4 = arith.constant 0 : index
    %23 = vector.load %arg1[%c0, %c0_2, %c0_3, %c0_4] : memref<1x4x4x128xf32, #tpu.memory_space<vmem>>, vector<1x1x4x128xf32>
    %24 = vector.shape_cast %23 : vector<1x1x4x128xf32> to vector<4x128xf32>
    %c0_5 = arith.constant 0 : index
    %c1 = arith.constant 1 : index
    %c0_6 = arith.constant 0 : index
    %c0_7 = arith.constant 0 : index
    %25 = vector.load %arg1[%c0_5, %c1, %c0_6, %c0_7] : memref<1x4x4x128xf32, #tpu.memory_space<vmem>>, vector<1x1x4x128xf32>
    %26 = vector.shape_cast %25 : vector<1x1x4x128xf32> to vector<4x128xf32>
    %27 = arith.maximumf %24, %26 : vector<4x128xf32>
    %c0_8 = arith.constant 0 : index
    %c2 = arith.constant 2 : index
    %c0_9 = arith.constant 0 : index
    %c0_10 = arith.constant 0 : index
    %28 = vector.load %arg1[%c0_8, %c2, %c0_9, %c0_10] : memref<1x4x4x128xf32, #tpu.memory_space<vmem>>, vector<1x1x4x128xf32>
    %29 = vector.shape_cast %28 : vector<1x1x4x128xf32> to vector<4x128xf32>
    %c0_11 = arith.constant 0 : index
    %c3 = arith.constant 3 : index
    %c0_12 = arith.constant 0 : index
    %c0_13 = arith.constant 0 : index
    %30 = vector.load %arg1[%c0_11, %c3, %c0_12, %c0_13] : memref<1x4x4x128xf32, #tpu.memory_space<vmem>>, vector<1x1x4x128xf32>
    %31 = vector.shape_cast %30 : vector<1x1x4x128xf32> to vector<4x128xf32>
    %32 = arith.maximumf %29, %31 : vector<4x128xf32>
    %33 = arith.maximumf %27, %32 : vector<4x128xf32>
    %c0_14 = arith.constant 0 : index
    %c0_15 = arith.constant 0 : index
    %34 = vector.load %arg2[%c0_14, %c0_15] : memref<4x9xf32, #tpu.memory_space<vmem>>, vector<4x9xf32>
    %35 = vector.broadcast %12 : vector<1x128xf32> to vector<4x128xf32>
    %36 = arith.mulf %33, %35 : vector<4x128xf32>
    %37 = vector.broadcast %14 : vector<1x128xf32> to vector<4x128xf32>
    %38 = arith.mulf %33, %37 : vector<4x128xf32>
    %39 = vector.extract_strided_slice %34 {offsets = [0, 4], sizes = [4, 1], strides = [1, 1]} : vector<4x9xf32> to vector<4x1xf32>
    %40 = vector.broadcast %39 : vector<4x1xf32> to vector<4x128xf32>
    %41 = arith.mulf %33, %40 : vector<4x128xf32>
    %c0_16 = arith.constant 0 : index
    %c0_17 = arith.constant 0 : index
    %42 = vector.load %arg3[%c0_16, %c0_17] : memref<4x1xf32, #tpu.memory_space<vmem>>, vector<4x1xf32>
    %43 = vector.broadcast %42 : vector<4x1xf32> to vector<4x128xf32>
    %44 = arith.addf %41, %43 : vector<4x128xf32>
    %c127_i32 = arith.constant 127 : i32
    %45 = tpu.dynamic_rotate %36 by %c127_i32 dim 1 : vector<4x128xf32>, i32 -> vector<4x128xf32>
    %46 = vector.extract_strided_slice %34 {offsets = [0, 5], sizes = [4, 1], strides = [1, 1]} : vector<4x9xf32> to vector<4x1xf32>
    %47 = vector.broadcast %46 : vector<4x1xf32> to vector<4x128xf32>
    %48 = arith.mulf %45, %47 : vector<4x128xf32>
    %49 = arith.addf %44, %48 : vector<4x128xf32>
    %c1_i32_18 = arith.constant 1 : i32
    %50 = tpu.dynamic_rotate %38 by %c1_i32_18 dim 1 : vector<4x128xf32>, i32 -> vector<4x128xf32>
    %51 = vector.extract_strided_slice %34 {offsets = [0, 3], sizes = [4, 1], strides = [1, 1]} : vector<4x9xf32> to vector<4x1xf32>
    %52 = vector.broadcast %51 : vector<4x1xf32> to vector<4x128xf32>
    %53 = arith.mulf %50, %52 : vector<4x128xf32>
    %54 = arith.addf %49, %53 : vector<4x128xf32>
    %c120_i32 = arith.constant 120 : i32
    %55 = tpu.dynamic_rotate %33 by %c120_i32 dim 1 : vector<4x128xf32>, i32 -> vector<4x128xf32>
    %56 = vector.extract_strided_slice %34 {offsets = [0, 7], sizes = [4, 1], strides = [1, 1]} : vector<4x9xf32> to vector<4x1xf32>
    %57 = vector.broadcast %56 : vector<4x1xf32> to vector<4x128xf32>
    %58 = arith.mulf %55, %57 : vector<4x128xf32>
    %c119_i32 = arith.constant 119 : i32
    %59 = tpu.dynamic_rotate %36 by %c119_i32 dim 1 : vector<4x128xf32>, i32 -> vector<4x128xf32>
    %60 = vector.extract_strided_slice %34 {offsets = [0, 8], sizes = [4, 1], strides = [1, 1]} : vector<4x9xf32> to vector<4x1xf32>
    %61 = vector.broadcast %60 : vector<4x1xf32> to vector<4x128xf32>
    %62 = arith.mulf %59, %61 : vector<4x128xf32>
    %63 = arith.addf %58, %62 : vector<4x128xf32>
    %c121_i32 = arith.constant 121 : i32
    %64 = tpu.dynamic_rotate %38 by %c121_i32 dim 1 : vector<4x128xf32>, i32 -> vector<4x128xf32>
    %65 = vector.extract_strided_slice %34 {offsets = [0, 6], sizes = [4, 1], strides = [1, 1]} : vector<4x9xf32> to vector<4x1xf32>
    %66 = vector.broadcast %65 : vector<4x1xf32> to vector<4x128xf32>
    %67 = arith.mulf %64, %66 : vector<4x128xf32>
    %68 = arith.addf %63, %67 : vector<4x128xf32>
    %69 = vector.broadcast %18 : vector<1x128xf32> to vector<4x128xf32>
    %70 = arith.mulf %68, %69 : vector<4x128xf32>
    %71 = arith.addf %54, %70 : vector<4x128xf32>
    %c8_i32 = arith.constant 8 : i32
    %72 = tpu.dynamic_rotate %33 by %c8_i32 dim 1 : vector<4x128xf32>, i32 -> vector<4x128xf32>
    %73 = vector.extract_strided_slice %34 {offsets = [0, 1], sizes = [4, 1], strides = [1, 1]} : vector<4x9xf32> to vector<4x1xf32>
    %74 = vector.broadcast %73 : vector<4x1xf32> to vector<4x128xf32>
    %75 = arith.mulf %72, %74 : vector<4x128xf32>
    %c7_i32_19 = arith.constant 7 : i32
    %76 = tpu.dynamic_rotate %36 by %c7_i32_19 dim 1 : vector<4x128xf32>, i32 -> vector<4x128xf32>
    %77 = vector.extract_strided_slice %34 {offsets = [0, 2], sizes = [4, 1], strides = [1, 1]} : vector<4x9xf32> to vector<4x1xf32>
    %78 = vector.broadcast %77 : vector<4x1xf32> to vector<4x128xf32>
    %79 = arith.mulf %76, %78 : vector<4x128xf32>
    %80 = arith.addf %75, %79 : vector<4x128xf32>
    %c9_i32 = arith.constant 9 : i32
    %81 = tpu.dynamic_rotate %38 by %c9_i32 dim 1 : vector<4x128xf32>, i32 -> vector<4x128xf32>
    %82 = vector.extract_strided_slice %34 {offsets = [0, 0], sizes = [4, 1], strides = [1, 1]} : vector<4x9xf32> to vector<4x1xf32>
    %83 = vector.broadcast %82 : vector<4x1xf32> to vector<4x128xf32>
    %84 = arith.mulf %81, %83 : vector<4x128xf32>
    %85 = arith.addf %80, %84 : vector<4x128xf32>
    %86 = vector.broadcast %22 : vector<1x128xf32> to vector<4x128xf32>
    %87 = arith.mulf %85, %86 : vector<4x128xf32>
    %88 = arith.addf %71, %87 : vector<4x128xf32>
    %c0_20 = arith.constant 0 : index
    %c0_21 = arith.constant 0 : index
    %89 = vector.load %arg4[%c0_20, %c0_21] : memref<8x4xf32, #tpu.memory_space<vmem>>, vector<8x4xf32>
    %90 = vector.extract_strided_slice %89 {offsets = [0, 0], sizes = [8, 1], strides = [1, 1]} : vector<8x4xf32> to vector<8x1xf32>
    %91 = vector.extract_strided_slice %88 {offsets = [0, 0], sizes = [1, 128], strides = [1, 1]} : vector<4x128xf32> to vector<1x128xf32>
    %92 = vector.broadcast %90 : vector<8x1xf32> to vector<8x128xf32>
    %93 = vector.broadcast %91 : vector<1x128xf32> to vector<8x128xf32>
    %94 = arith.mulf %92, %93 : vector<8x128xf32>
    %c0_22 = arith.constant 0 : index
    %c0_23 = arith.constant 0 : index
    %95 = vector.load %arg5[%c0_22, %c0_23] : memref<8x1xf32, #tpu.memory_space<vmem>>, vector<8x1xf32>
    %96 = vector.broadcast %95 : vector<8x1xf32> to vector<8x128xf32>
    %97 = arith.addf %94, %96 : vector<8x128xf32>
    %98 = vector.extract_strided_slice %89 {offsets = [0, 1], sizes = [8, 1], strides = [1, 1]} : vector<8x4xf32> to vector<8x1xf32>
    %99 = vector.extract_strided_slice %88 {offsets = [1, 0], sizes = [1, 128], strides = [1, 1]} : vector<4x128xf32> to vector<1x128xf32>
    %100 = vector.broadcast %98 : vector<8x1xf32> to vector<8x128xf32>
    %101 = vector.broadcast %99 : vector<1x128xf32> to vector<8x128xf32>
    %102 = arith.mulf %100, %101 : vector<8x128xf32>
    %103 = arith.addf %97, %102 : vector<8x128xf32>
    %104 = vector.extract_strided_slice %89 {offsets = [0, 2], sizes = [8, 1], strides = [1, 1]} : vector<8x4xf32> to vector<8x1xf32>
    %105 = vector.extract_strided_slice %88 {offsets = [2, 0], sizes = [1, 128], strides = [1, 1]} : vector<4x128xf32> to vector<1x128xf32>
    %106 = vector.broadcast %104 : vector<8x1xf32> to vector<8x128xf32>
    %107 = vector.broadcast %105 : vector<1x128xf32> to vector<8x128xf32>
    %108 = arith.mulf %106, %107 : vector<8x128xf32>
    %109 = arith.addf %103, %108 : vector<8x128xf32>
    %110 = vector.extract_strided_slice %89 {offsets = [0, 3], sizes = [8, 1], strides = [1, 1]} : vector<8x4xf32> to vector<8x1xf32>
    %111 = vector.extract_strided_slice %88 {offsets = [3, 0], sizes = [1, 128], strides = [1, 1]} : vector<4x128xf32> to vector<1x128xf32>
    %112 = vector.broadcast %110 : vector<8x1xf32> to vector<8x128xf32>
    %113 = vector.broadcast %111 : vector<1x128xf32> to vector<8x128xf32>
    %114 = arith.mulf %112, %113 : vector<8x128xf32>
    %115 = arith.addf %109, %114 : vector<8x128xf32>
    %cst = arith.constant 0.00999999977 : f32
    %116 = vector.broadcast %cst : f32 to vector<8x128xf32>
    %117 = arith.mulf %116, %115 : vector<8x128xf32>
    %118 = arith.maximumf %115, %117 : vector<8x128xf32>
    %c0_24 = arith.constant 0 : index
    %c0_25 = arith.constant 0 : index
    %119 = vector.load %arg6[%c0_24, %c0_25] : memref<8x9xf32, #tpu.memory_space<vmem>>, vector<8x9xf32>
    %120 = vector.broadcast %12 : vector<1x128xf32> to vector<8x128xf32>
    %121 = arith.mulf %118, %120 : vector<8x128xf32>
    %122 = vector.broadcast %14 : vector<1x128xf32> to vector<8x128xf32>
    %123 = arith.mulf %118, %122 : vector<8x128xf32>
    %124 = vector.extract_strided_slice %119 {offsets = [0, 4], sizes = [8, 1], strides = [1, 1]} : vector<8x9xf32> to vector<8x1xf32>
    %125 = vector.broadcast %124 : vector<8x1xf32> to vector<8x128xf32>
    %126 = arith.mulf %118, %125 : vector<8x128xf32>
    %c0_26 = arith.constant 0 : index
    %c0_27 = arith.constant 0 : index
    %127 = vector.load %arg7[%c0_26, %c0_27] : memref<8x1xf32, #tpu.memory_space<vmem>>, vector<8x1xf32>
    %128 = vector.broadcast %127 : vector<8x1xf32> to vector<8x128xf32>
    %129 = arith.addf %126, %128 : vector<8x128xf32>
    %c127_i32_28 = arith.constant 127 : i32
    %130 = tpu.dynamic_rotate %121 by %c127_i32_28 dim 1 : vector<8x128xf32>, i32 -> vector<8x128xf32>
    %131 = vector.extract_strided_slice %119 {offsets = [0, 5], sizes = [8, 1], strides = [1, 1]} : vector<8x9xf32> to vector<8x1xf32>
    %132 = vector.broadcast %131 : vector<8x1xf32> to vector<8x128xf32>
    %133 = arith.mulf %130, %132 : vector<8x128xf32>
    %134 = arith.addf %129, %133 : vector<8x128xf32>
    %c1_i32_29 = arith.constant 1 : i32
    %135 = tpu.dynamic_rotate %123 by %c1_i32_29 dim 1 : vector<8x128xf32>, i32 -> vector<8x128xf32>
    %136 = vector.extract_strided_slice %119 {offsets = [0, 3], sizes = [8, 1], strides = [1, 1]} : vector<8x9xf32> to vector<8x1xf32>
    %137 = vector.broadcast %136 : vector<8x1xf32> to vector<8x128xf32>
    %138 = arith.mulf %135, %137 : vector<8x128xf32>
    %139 = arith.addf %134, %138 : vector<8x128xf32>
    %c120_i32_30 = arith.constant 120 : i32
    %140 = tpu.dynamic_rotate %118 by %c120_i32_30 dim 1 : vector<8x128xf32>, i32 -> vector<8x128xf32>
    %141 = vector.extract_strided_slice %119 {offsets = [0, 7], sizes = [8, 1], strides = [1, 1]} : vector<8x9xf32> to vector<8x1xf32>
    %142 = vector.broadcast %141 : vector<8x1xf32> to vector<8x128xf32>
    %143 = arith.mulf %140, %142 : vector<8x128xf32>
    %c119_i32_31 = arith.constant 119 : i32
    %144 = tpu.dynamic_rotate %121 by %c119_i32_31 dim 1 : vector<8x128xf32>, i32 -> vector<8x128xf32>
    %145 = vector.extract_strided_slice %119 {offsets = [0, 8], sizes = [8, 1], strides = [1, 1]} : vector<8x9xf32> to vector<8x1xf32>
    %146 = vector.broadcast %145 : vector<8x1xf32> to vector<8x128xf32>
    %147 = arith.mulf %144, %146 : vector<8x128xf32>
    %148 = arith.addf %143, %147 : vector<8x128xf32>
    %c121_i32_32 = arith.constant 121 : i32
    %149 = tpu.dynamic_rotate %123 by %c121_i32_32 dim 1 : vector<8x128xf32>, i32 -> vector<8x128xf32>
    %150 = vector.extract_strided_slice %119 {offsets = [0, 6], sizes = [8, 1], strides = [1, 1]} : vector<8x9xf32> to vector<8x1xf32>
    %151 = vector.broadcast %150 : vector<8x1xf32> to vector<8x128xf32>
    %152 = arith.mulf %149, %151 : vector<8x128xf32>
    %153 = arith.addf %148, %152 : vector<8x128xf32>
    %154 = vector.broadcast %18 : vector<1x128xf32> to vector<8x128xf32>
    %155 = arith.mulf %153, %154 : vector<8x128xf32>
    %156 = arith.addf %139, %155 : vector<8x128xf32>
    %c8_i32_33 = arith.constant 8 : i32
    %157 = tpu.dynamic_rotate %118 by %c8_i32_33 dim 1 : vector<8x128xf32>, i32 -> vector<8x128xf32>
    %158 = vector.extract_strided_slice %119 {offsets = [0, 1], sizes = [8, 1], strides = [1, 1]} : vector<8x9xf32> to vector<8x1xf32>
    %159 = vector.broadcast %158 : vector<8x1xf32> to vector<8x128xf32>
    %160 = arith.mulf %157, %159 : vector<8x128xf32>
    %c7_i32_34 = arith.constant 7 : i32
    %161 = tpu.dynamic_rotate %121 by %c7_i32_34 dim 1 : vector<8x128xf32>, i32 -> vector<8x128xf32>
    %162 = vector.extract_strided_slice %119 {offsets = [0, 2], sizes = [8, 1], strides = [1, 1]} : vector<8x9xf32> to vector<8x1xf32>
    %163 = vector.broadcast %162 : vector<8x1xf32> to vector<8x128xf32>
    %164 = arith.mulf %161, %163 : vector<8x128xf32>
    %165 = arith.addf %160, %164 : vector<8x128xf32>
    %c9_i32_35 = arith.constant 9 : i32
    %166 = tpu.dynamic_rotate %123 by %c9_i32_35 dim 1 : vector<8x128xf32>, i32 -> vector<8x128xf32>
    %167 = vector.extract_strided_slice %119 {offsets = [0, 0], sizes = [8, 1], strides = [1, 1]} : vector<8x9xf32> to vector<8x1xf32>
    %168 = vector.broadcast %167 : vector<8x1xf32> to vector<8x128xf32>
    %169 = arith.mulf %166, %168 : vector<8x128xf32>
    %170 = arith.addf %165, %169 : vector<8x128xf32>
    %171 = vector.broadcast %22 : vector<1x128xf32> to vector<8x128xf32>
    %172 = arith.mulf %170, %171 : vector<8x128xf32>
    %173 = arith.addf %156, %172 : vector<8x128xf32>
    %c0_36 = arith.constant 0 : index
    %c0_37 = arith.constant 0 : index
    %174 = vector.load %arg8[%c0_36, %c0_37] : memref<8x8xf32, #tpu.memory_space<vmem>>, vector<8x8xf32>
    %175 = vector.extract_strided_slice %174 {offsets = [0, 0], sizes = [8, 1], strides = [1, 1]} : vector<8x8xf32> to vector<8x1xf32>
    %176 = vector.extract_strided_slice %173 {offsets = [0, 0], sizes = [1, 128], strides = [1, 1]} : vector<8x128xf32> to vector<1x128xf32>
    %177 = vector.broadcast %175 : vector<8x1xf32> to vector<8x128xf32>
    %178 = vector.broadcast %176 : vector<1x128xf32> to vector<8x128xf32>
    %179 = arith.mulf %177, %178 : vector<8x128xf32>
    %c0_38 = arith.constant 0 : index
    %c0_39 = arith.constant 0 : index
    %180 = vector.load %arg9[%c0_38, %c0_39] : memref<8x1xf32, #tpu.memory_space<vmem>>, vector<8x1xf32>
    %181 = vector.broadcast %180 : vector<8x1xf32> to vector<8x128xf32>
    %182 = arith.addf %179, %181 : vector<8x128xf32>
    %183 = vector.extract_strided_slice %174 {offsets = [0, 1], sizes = [8, 1], strides = [1, 1]} : vector<8x8xf32> to vector<8x1xf32>
    %184 = vector.extract_strided_slice %173 {offsets = [1, 0], sizes = [1, 128], strides = [1, 1]} : vector<8x128xf32> to vector<1x128xf32>
    %185 = vector.broadcast %183 : vector<8x1xf32> to vector<8x128xf32>
    %186 = vector.broadcast %184 : vector<1x128xf32> to vector<8x128xf32>
    %187 = arith.mulf %185, %186 : vector<8x128xf32>
    %188 = arith.addf %182, %187 : vector<8x128xf32>
    %189 = vector.extract_strided_slice %174 {offsets = [0, 2], sizes = [8, 1], strides = [1, 1]} : vector<8x8xf32> to vector<8x1xf32>
    %190 = vector.extract_strided_slice %173 {offsets = [2, 0], sizes = [1, 128], strides = [1, 1]} : vector<8x128xf32> to vector<1x128xf32>
    %191 = vector.broadcast %189 : vector<8x1xf32> to vector<8x128xf32>
    %192 = vector.broadcast %190 : vector<1x128xf32> to vector<8x128xf32>
    %193 = arith.mulf %191, %192 : vector<8x128xf32>
    %194 = arith.addf %188, %193 : vector<8x128xf32>
    %195 = vector.extract_strided_slice %174 {offsets = [0, 3], sizes = [8, 1], strides = [1, 1]} : vector<8x8xf32> to vector<8x1xf32>
    %196 = vector.extract_strided_slice %173 {offsets = [3, 0], sizes = [1, 128], strides = [1, 1]} : vector<8x128xf32> to vector<1x128xf32>
    %197 = vector.broadcast %195 : vector<8x1xf32> to vector<8x128xf32>
    %198 = vector.broadcast %196 : vector<1x128xf32> to vector<8x128xf32>
    %199 = arith.mulf %197, %198 : vector<8x128xf32>
    %200 = arith.addf %194, %199 : vector<8x128xf32>
    %201 = vector.extract_strided_slice %174 {offsets = [0, 4], sizes = [8, 1], strides = [1, 1]} : vector<8x8xf32> to vector<8x1xf32>
    %202 = vector.extract_strided_slice %173 {offsets = [4, 0], sizes = [1, 128], strides = [1, 1]} : vector<8x128xf32> to vector<1x128xf32>
    %203 = vector.broadcast %201 : vector<8x1xf32> to vector<8x128xf32>
    %204 = vector.broadcast %202 : vector<1x128xf32> to vector<8x128xf32>
    %205 = arith.mulf %203, %204 : vector<8x128xf32>
    %206 = arith.addf %200, %205 : vector<8x128xf32>
    %207 = vector.extract_strided_slice %174 {offsets = [0, 5], sizes = [8, 1], strides = [1, 1]} : vector<8x8xf32> to vector<8x1xf32>
    %208 = vector.extract_strided_slice %173 {offsets = [5, 0], sizes = [1, 128], strides = [1, 1]} : vector<8x128xf32> to vector<1x128xf32>
    %209 = vector.broadcast %207 : vector<8x1xf32> to vector<8x128xf32>
    %210 = vector.broadcast %208 : vector<1x128xf32> to vector<8x128xf32>
    %211 = arith.mulf %209, %210 : vector<8x128xf32>
    %212 = arith.addf %206, %211 : vector<8x128xf32>
    %213 = vector.extract_strided_slice %174 {offsets = [0, 6], sizes = [8, 1], strides = [1, 1]} : vector<8x8xf32> to vector<8x1xf32>
    %214 = vector.extract_strided_slice %173 {offsets = [6, 0], sizes = [1, 128], strides = [1, 1]} : vector<8x128xf32> to vector<1x128xf32>
    %215 = vector.broadcast %213 : vector<8x1xf32> to vector<8x128xf32>
    %216 = vector.broadcast %214 : vector<1x128xf32> to vector<8x128xf32>
    %217 = arith.mulf %215, %216 : vector<8x128xf32>
    %218 = arith.addf %212, %217 : vector<8x128xf32>
    %219 = vector.extract_strided_slice %174 {offsets = [0, 7], sizes = [8, 1], strides = [1, 1]} : vector<8x8xf32> to vector<8x1xf32>
    %220 = vector.extract_strided_slice %173 {offsets = [7, 0], sizes = [1, 128], strides = [1, 1]} : vector<8x128xf32> to vector<1x128xf32>
    %221 = vector.broadcast %219 : vector<8x1xf32> to vector<8x128xf32>
    %222 = vector.broadcast %220 : vector<1x128xf32> to vector<8x128xf32>
    %223 = arith.mulf %221, %222 : vector<8x128xf32>
    %224 = arith.addf %218, %223 : vector<8x128xf32>
    %cst_40 = arith.constant 0.00999999977 : f32
    %225 = vector.broadcast %cst_40 : f32 to vector<8x128xf32>
    %226 = arith.mulf %225, %224 : vector<8x128xf32>
    %227 = arith.maximumf %224, %226 : vector<8x128xf32>
    %c0_41 = arith.constant 0 : index
    %c0_42 = arith.constant 0 : index
    %c0_43 = arith.constant 0 : index
    %228 = vector.load %arg10[%c0_41, %c0_42, %c0_43] : memref<1x8x128xf32, #tpu.memory_space<vmem>>, vector<1x8x128xf32>
    %229 = vector.shape_cast %228 : vector<1x8x128xf32> to vector<8x128xf32>
    %230 = vector.shape_cast %227 : vector<8x128xf32> to vector<1x8x128xf32>
    tpu.vector_store %arg10[%c0_41, %c0_42, %c0_43], %230 {strides = array<i32>} : memref<1x8x128xf32, #tpu.memory_space<vmem>>, vector<1x8x128xf32>,
    return
  }
  func.func @transform_0(%arg0: i32) -> (i32, i32, i32, i32) {
    %c0_i32 = arith.constant 0 : i32
    %c0_i32_0 = arith.constant 0 : i32
    %c0_i32_1 = arith.constant 0 : i32
    %c0_i32_2 = arith.constant 0 : i32
    return %arg0, %c0_i32, %c0_i32_0, %c0_i32_1 : i32, i32, i32, i32
  }
  func.func @transform_1(%arg0: i32) -> (i32, i32) {
    %c0_i32 = arith.constant 0 : i32
    %c0_i32_0 = arith.constant 0 : i32
    %c0_i32_1 = arith.constant 0 : i32
    return %c0_i32, %c0_i32_0 : i32, i32
  }
  func.func @transform_2(%arg0: i32) -> (i32, i32) {
    %c0_i32 = arith.constant 0 : i32
    %c0_i32_0 = arith.constant 0 : i32
    %c0_i32_1 = arith.constant 0 : i32
    return %c0_i32, %c0_i32_0 : i32, i32
  }
  func.func @transform_3(%arg0: i32) -> (i32, i32) {
    %c0_i32 = arith.constant 0 : i32
    %c0_i32_0 = arith.constant 0 : i32
    %c0_i32_1 = arith.constant 0 : i32
    return %c0_i32, %c0_i32_0 : i32, i32
  }
  func.func @transform_4(%arg0: i32) -> (i32, i32) {
    %c0_i32 = arith.constant 0 : i32
    %c0_i32_0 = arith.constant 0 : i32
    %c0_i32_1 = arith.constant 0 : i32
    return %c0_i32, %c0_i32_0 : i32, i32
  }
  func.func @transform_5(%arg0: i32) -> (i32, i32) {
    %c0_i32 = arith.constant 0 : i32
    %c0_i32_0 = arith.constant 0 : i32
    %c0_i32_1 = arith.constant 0 : i32
    return %c0_i32, %c0_i32_0 : i32, i32
  }
  func.func @transform_6(%arg0: i32) -> (i32, i32) {
    %c0_i32 = arith.constant 0 : i32
    %c0_i32_0 = arith.constant 0 : i32
    %c0_i32_1 = arith.constant 0 : i32
    return %c0_i32, %c0_i32_0 : i32, i32
  }
  func.func @transform_7(%arg0: i32) -> (i32, i32) {
    %c0_i32 = arith.constant 0 : i32
    %c0_i32_0 = arith.constant 0 : i32
    %c0_i32_1 = arith.constant 0 : i32
    return %c0_i32, %c0_i32_0 : i32, i32
  }
  func.func @transform_8(%arg0: i32) -> (i32, i32) {
    %c0_i32 = arith.constant 0 : i32
    %c0_i32_0 = arith.constant 0 : i32
    %c0_i32_1 = arith.constant 0 : i32
    return %c0_i32, %c0_i32_0 : i32, i32
  }
  func.func @transform_9(%arg0: i32) -> (i32, i32, i32) {
    %c0_i32 = arith.constant 0 : i32
    %c0_i32_0 = arith.constant 0 : i32
    %c0_i32_1 = arith.constant 0 : i32
    return %arg0, %c0_i32, %c0_i32_0 : i32, i32, i32
  }
}

</mosaic_0001>

<llo_original>
// kernel: down_forward.1
$region0: #{down_forward.1}
  #allocation0 [shape = 'u32[]', space=smem, size = 0x4, offset = 0x4, fixed_abs, tag = 'smem constant byte address 0x4 - core index']
  #allocation1 [shape = 'u32[144,128]{1,0:T(1,128)}', space=vmem, size = 0x12000, scoped, tag = 'internal scratch']
  %s0 = inlined_call_operand.vmem [shape: f32[1,4,4,128], index: 0, kind: input, shape index: {}]
  %s1 = inlined_call_operand.vmem [shape: f32[4,9], index: 1, kind: input, shape index: {}]
  %s2 = inlined_call_operand.vmem [shape: f32[4,1], index: 2, kind: input, shape index: {}]
  %s3 = inlined_call_operand.vmem [shape: f32[8,4], index: 3, kind: input, shape index: {}]
  %s4 = inlined_call_operand.vmem [shape: f32[8,1], index: 4, kind: input, shape index: {}]
  %s5 = inlined_call_operand.vmem [shape: f32[8,9], index: 5, kind: input, shape index: {}]
  %s6 = inlined_call_operand.vmem [shape: f32[8,1], index: 6, kind: input, shape index: {}]
  %s7 = inlined_call_operand.vmem [shape: f32[8,8], index: 7, kind: input, shape index: {}]
  %s8 = inlined_call_operand.vmem [shape: f32[8,1], index: 8, kind: input, shape index: {}]
  %s9 = inlined_call_operand.vmem [shape: f32[1,8,128], index: 9, kind: output, shape index: {}]
  %s10 = sld [smem:[#allocation0]]
  $region46: #{down_forward.1} parent=0
    _
  %s12 = ssub.s32 1, %s10
  %s13 = scalar_select 0, %s12, %s10
  // Predicated region
  $region2: #{down_forward.1} parent=0 // pred_check
    _
  $region3: #{down_forward.1} parent=0 // pred_check_branch
    %15 = sbr.rel (0) target = $region5
  $region4: #{down_forward.1} parent=0 // pred_region
    _
  $region5: #{down_forward.1} parent=0 // pred_fallthru
    _
  // Predicated region
  $region6: #{down_forward.1} parent=0 // pred_check
    _
  $region7: #{down_forward.1} parent=0 // pred_check_branch
    %17 = sbr.rel (0) target = $region9
  $region8: #{down_forward.1} parent=0 // pred_region
    _
  $region9: #{down_forward.1} parent=0 // pred_fallthru
    _
  // Predicated region
  $region10: #{down_forward.1} parent=0 // pred_check
    _
  $region11: #{down_forward.1} parent=0 // pred_check_branch
    %19 = sbr.rel (0) target = $region13
  $region12: #{down_forward.1} parent=0 // pred_region
    _
  $region13: #{down_forward.1} parent=0 // pred_fallthru
    _
  // Predicated region
  $region14: #{down_forward.1} parent=0 // pred_check
    _
  $region15: #{down_forward.1} parent=0 // pred_check_branch
    %21 = sbr.rel (0) target = $region17
  $region16: #{down_forward.1} parent=0 // pred_region
    _
  $region17: #{down_forward.1} parent=0 // pred_fallthru
    _
  // Predicated region
  $region18: #{down_forward.1} parent=0 // pred_check
    _
  $region19: #{down_forward.1} parent=0 // pred_check_branch
    %23 = sbr.rel (0) target = $region21
  $region20: #{down_forward.1} parent=0 // pred_region
    _
  $region21: #{down_forward.1} parent=0 // pred_fallthru
    _
  // Predicated region
  $region22: #{down_forward.1} parent=0 // pred_check
    _
  $region23: #{down_forward.1} parent=0 // pred_check_branch
    %25 = sbr.rel (0) target = $region25
  $region24: #{down_forward.1} parent=0 // pred_region
    _
  $region25: #{down_forward.1} parent=0 // pred_fallthru
    _
  // Predicated region
  $region26: #{down_forward.1} parent=0 // pred_check
    _
  $region27: #{down_forward.1} parent=0 // pred_check_branch
    %27 = sbr.rel (0) target = $region29
  $region28: #{down_forward.1} parent=0 // pred_region
    _
  $region29: #{down_forward.1} parent=0 // pred_fallthru
    _
  // Predicated region
  $region30: #{down_forward.1} parent=0 // pred_check
    _
  $region31: #{down_forward.1} parent=0 // pred_check_branch
    %29 = sbr.rel (0) target = $region33
  $region32: #{down_forward.1} parent=0 // pred_region
    _
  $region33: #{down_forward.1} parent=0 // pred_fallthru
    _
  // Predicated region
  $region34: #{down_forward.1} parent=0 // pred_check
    _
  $region35: #{down_forward.1} parent=0 // pred_check_branch
    %31 = sbr.rel (0) target = $region37
  $region36: #{down_forward.1} parent=0 // pred_region
    _
  $region37: #{down_forward.1} parent=0 // pred_fallthru
    _
  %v32 = vlaneseq
  %v33 = vand.u32 %v32, 127
  %v34 = vand.u32 %v33, 63
  %v35 = vand.u32 %v34, 7
  %v36 = vshra.s32 %v34, 3
  %vm37 = vcmp.ge.s32.totalorder %v35, 1
  %vm38 = vcmp.le.s32.totalorder %v35, 6
  %v39 = vsel %vm37, 1, 0
  %v40 = vcvt.s32.f32 %v39
  %v41 = vsel %vm38, 1, 0
  %v42 = vcvt.s32.f32 %v41
  %vm43 = vcmp.le.s32.totalorder %v36, 6
  %v44 = vsel %vm43, 1, 0
  %v45 = vcvt.s32.f32 %v44
  %vm46 = vcmp.ge.s32.totalorder %v36, 1
  %v47 = vsel %vm46, 1, 0
  %v48 = vcvt.s32.f32 %v47
  %v49 = vld [vmem:[%s0] sm:$0xf]
  %s50 = scalar_lea.vmem %s0, 4
  %v51 = vld [vmem:[%s50] sm:$0xf]
  %v52 = vmax.f32 %v49, %v51
  %s53 = scalar_lea.vmem %s0, 8
  %v54 = vld [vmem:[%s53] sm:$0xf]
  %s55 = scalar_lea.vmem %s0, 12
  %v56 = vld [vmem:[%s55] sm:$0xf]
  %v57 = vmax.f32 %v54, %v56
  %v58 = vmax.f32 %v52, %v57
  %v59 = vld [vmem:[%s1] sm:$0xf]
  %v60 = vmul.f32 %v58, %v40
  %v61 = vmul.f32 %v58, %v42
  %63 = vset.pattern.permute.xlu0 4
  %64 = vperm.xlu0 %63, %v59
  %v65 = vpop.permute.xlu0 %64
  %v67 = vmul.f32 %v58, %v65
  %v68 = vld [vmem:[%s2] sm:$0xf]
  %70 = vset.pattern.permute.xlu0 0
  %71 = vperm.xlu0 %70, %v68
  %v72 = vpop.permute.xlu0 %71
  %v74 = vadd.f32 %v67, %v72
  %75 = vrot.lane.b32.xlu0 %v60, 127
  %v76 = vpop.permute.xlu0 %75
  %77 = vset.pattern.permute.xlu0 5
  %78 = vperm.xlu0 %77, %v59
  %v79 = vpop.permute.xlu0 %78
  %v81 = vmul.f32 %v76, %v79
  %v82 = vadd.f32 %v74, %v81
  %83 = vrot.lane.b32.xlu0 %v61, 1
  %v84 = vpop.permute.xlu0 %83
  %85 = vset.pattern.permute.xlu0 3
  %86 = vperm.xlu0 %85, %v59
  %v87 = vpop.permute.xlu0 %86
  %v89 = vmul.f32 %v84, %v87
  %v90 = vadd.f32 %v82, %v89
  %91 = vrot.lane.b32.xlu0 %v58, 120
  %v92 = vpop.permute.xlu0 %91
  %93 = vset.pattern.permute.xlu0 7
  %94 = vperm.xlu0 %93, %v59
  %v95 = vpop.permute.xlu0 %94
  %v97 = vmul.f32 %v92, %v95
  %98 = vrot.lane.b32.xlu0 %v60, 119
  %v99 = vpop.permute.xlu0 %98
  %100 = vset.pattern.permute.xlu0 8
  %101 = vperm.xlu0 %100, %v59
  %v102 = vpop.permute.xlu0 %101
  %v104 = vmul.f32 %v99, %v102
  %v105 = vadd.f32 %v97, %v104
  %106 = vrot.lane.b32.xlu0 %v61, 121
  %v107 = vpop.permute.xlu0 %106
  %108 = vset.pattern.permute.xlu0 6
  %109 = vperm.xlu0 %108, %v59
  %v110 = vpop.permute.xlu0 %109
  %v112 = vmul.f32 %v107, %v110
  %v113 = vadd.f32 %v105, %v112
  %v114 = vmul.f32 %v113, %v45
  %v115 = vadd.f32 %v90, %v114
  %116 = vrot.lane.b32.xlu0 %v58, 8
  %v117 = vpop.permute.xlu0 %116
  %118 = vset.pattern.permute.xlu0 1
  %119 = vperm.xlu0 %118, %v59
  %v120 = vpop.permute.xlu0 %119
  %v122 = vmul.f32 %v117, %v120
  %123 = vrot.lane.b32.xlu0 %v60, 7
  %v124 = vpop.permute.xlu0 %123
  %125 = vset.pattern.permute.xlu0 2
  %126 = vperm.xlu0 %125, %v59
  %v127 = vpop.permute.xlu0 %126
  %v129 = vmul.f32 %v124, %v127
  %v130 = vadd.f32 %v122, %v129
  %131 = vrot.lane.b32.xlu0 %v61, 9
  %v132 = vpop.permute.xlu0 %131
  %133 = vset.pattern.permute.xlu0 0
  %134 = vperm.xlu0 %133, %v59
  %v135 = vpop.permute.xlu0 %134
  %v137 = vmul.f32 %v132, %v135
  %v138 = vadd.f32 %v130, %v137
  %v139 = vmul.f32 %v138, %v48
  %v140 = vadd.f32 %v115, %v139
  %v141 = vld [vmem:[%s3] sm:$0xff]
  %143 = vset.pattern.permute.xlu0 0
  %144 = vperm.xlu0 %143, %v141
  %v145 = vpop.permute.xlu0 %144
  %v147 = vlaneseq
  %v148 = vshrl.u32 %v147, 7
  %v149 = vsub.s32 0, %v148
  %v150 = vrot.slane %v140, %v149
  %v151 = vmul.f32 %v145, %v150
  %v152 = vld [vmem:[%s4] sm:$0xff]
  %154 = vset.pattern.permute.xlu0 0
  %155 = vperm.xlu0 %154, %v152
  %v156 = vpop.permute.xlu0 %155
  %v158 = vadd.f32 %v151, %v156
  %159 = vset.pattern.permute.xlu0 1
  %160 = vperm.xlu0 %159, %v141
  %v161 = vpop.permute.xlu0 %160
  %v163 = vlaneseq
  %v164 = vshrl.u32 %v163, 7
  %v165 = vsub.s32 1, %v164
  %v166 = vrot.slane %v140, %v165
  %v167 = vmul.f32 %v161, %v166
  %v168 = vadd.f32 %v158, %v167
  %169 = vset.pattern.permute.xlu0 2
  %170 = vperm.xlu0 %169, %v141
  %v171 = vpop.permute.xlu0 %170
  %v173 = vlaneseq
  %v174 = vshrl.u32 %v173, 7
  %v175 = vsub.s32 2, %v174
  %v176 = vrot.slane %v140, %v175
  %v177 = vmul.f32 %v171, %v176
  %v178 = vadd.f32 %v168, %v177
  %179 = vset.pattern.permute.xlu0 3
  %180 = vperm.xlu0 %179, %v141
  %v181 = vpop.permute.xlu0 %180
  %v183 = vlaneseq
  %v184 = vshrl.u32 %v183, 7
  %v185 = vsub.s32 3, %v184
  %v186 = vrot.slane %v140, %v185
  %v187 = vmul.f32 %v181, %v186
  %v188 = vadd.f32 %v178, %v187
  %v189 = vmul.f32 %v188, 0.01
  %v190 = vmax.f32 %v188, %v189
  %v191 = vld [vmem:[%s5] sm:$0xff]
  %v192 = vmul.f32 %v190, %v40
  %v193 = vmul.f32 %v190, %v42
  %195 = vset.pattern.permute.xlu0 4
  %196 = vperm.xlu0 %195, %v191
  %v197 = vpop.permute.xlu0 %196
  %v199 = vmul.f32 %v190, %v197
  %v200 = vld [vmem:[%s6] sm:$0xff]
  %202 = vset.pattern.permute.xlu0 0
  %203 = vperm.xlu0 %202, %v200
  %v204 = vpop.permute.xlu0 %203
  %v206 = vadd.f32 %v199, %v204
  %207 = vrot.lane.b32.xlu0 %v192, 127
  %v208 = vpop.permute.xlu0 %207
  %209 = vset.pattern.permute.xlu0 5
  %210 = vperm.xlu0 %209, %v191
  %v211 = vpop.permute.xlu0 %210
  %v213 = vmul.f32 %v208, %v211
  %v214 = vadd.f32 %v206, %v213
  %215 = vrot.lane.b32.xlu0 %v193, 1
  %v216 = vpop.permute.xlu0 %215
  %217 = vset.pattern.permute.xlu0 3
  %218 = vperm.xlu0 %217, %v191
  %v219 = vpop.permute.xlu0 %218
  %v221 = vmul.f32 %v216, %v219
  %v222 = vadd.f32 %v214, %v221
  %223 = vrot.lane.b32.xlu0 %v190, 120
  %v224 = vpop.permute.xlu0 %223
  %225 = vset.pattern.permute.xlu0 7
  %226 = vperm.xlu0 %225, %v191
  %v227 = vpop.permute.xlu0 %226
  %v229 = vmul.f32 %v224, %v227
  %230 = vrot.lane.b32.xlu0 %v192, 119
  %v231 = vpop.permute.xlu0 %230
  %232 = vset.pattern.permute.xlu0 8
  %233 = vperm.xlu0 %232, %v191
  %v234 = vpop.permute.xlu0 %233
  %v236 = vmul.f32 %v231, %v234
  %v237 = vadd.f32 %v229, %v236
  %238 = vrot.lane.b32.xlu0 %v193, 121
  %v239 = vpop.permute.xlu0 %238
  %240 = vset.pattern.permute.xlu0 6
  %241 = vperm.xlu0 %240, %v191
  %v242 = vpop.permute.xlu0 %241
  %v244 = vmul.f32 %v239, %v242
  %v245 = vadd.f32 %v237, %v244
  %v246 = vmul.f32 %v245, %v45
  %v247 = vadd.f32 %v222, %v246
  %248 = vrot.lane.b32.xlu0 %v190, 8
  %v249 = vpop.permute.xlu0 %248
  %250 = vset.pattern.permute.xlu0 1
  %251 = vperm.xlu0 %250, %v191
  %v252 = vpop.permute.xlu0 %251
  %v254 = vmul.f32 %v249, %v252
  %255 = vrot.lane.b32.xlu0 %v192, 7
  %v256 = vpop.permute.xlu0 %255
  %257 = vset.pattern.permute.xlu0 2
  %258 = vperm.xlu0 %257, %v191
  %v259 = vpop.permute.xlu0 %258
  %v261 = vmul.f32 %v256, %v259
  %v262 = vadd.f32 %v254, %v261
  %263 = vrot.lane.b32.xlu0 %v193, 9
  %v264 = vpop.permute.xlu0 %263
  %265 = vset.pattern.permute.xlu0 0
  %266 = vperm.xlu0 %265, %v191
  %v267 = vpop.permute.xlu0 %266
  %v269 = vmul.f32 %v264, %v267
  %v270 = vadd.f32 %v262, %v269
  %v271 = vmul.f32 %v270, %v48
  %v272 = vadd.f32 %v247, %v271
  %v273 = vld [vmem:[%s7] sm:$0xff]
  %275 = vset.pattern.permute.xlu0 0
  %276 = vperm.xlu0 %275, %v273
  %v277 = vpop.permute.xlu0 %276
  %v279 = vlaneseq
  %v280 = vshrl.u32 %v279, 7
  %v281 = vsub.s32 0, %v280
  %v282 = vrot.slane %v272, %v281
  %v283 = vmul.f32 %v277, %v282
  %v284 = vld [vmem:[%s8] sm:$0xff]
  %286 = vset.pattern.permute.xlu0 0
  %287 = vperm.xlu0 %286, %v284
  %v288 = vpop.permute.xlu0 %287
  %v290 = vadd.f32 %v283, %v288
  %291 = vset.pattern.permute.xlu0 1
  %292 = vperm.xlu0 %291, %v273
  %v293 = vpop.permute.xlu0 %292
  %v295 = vlaneseq
  %v296 = vshrl.u32 %v295, 7
  %v297 = vsub.s32 1, %v296
  %v298 = vrot.slane %v272, %v297
  %v299 = vmul.f32 %v293, %v298
  %v300 = vadd.f32 %v290, %v299
  %301 = vset.pattern.permute.xlu0 2
  %302 = vperm.xlu0 %301, %v273
  %v303 = vpop.permute.xlu0 %302
  %v305 = vlaneseq
  %v306 = vshrl.u32 %v305, 7
  %v307 = vsub.s32 2, %v306
  %v308 = vrot.slane %v272, %v307
  %v309 = vmul.f32 %v303, %v308
  %v310 = vadd.f32 %v300, %v309
  %311 = vset.pattern.permute.xlu0 3
  %312 = vperm.xlu0 %311, %v273
  %v313 = vpop.permute.xlu0 %312
  %v315 = vlaneseq
  %v316 = vshrl.u32 %v315, 7
  %v317 = vsub.s32 3, %v316
  %v318 = vrot.slane %v272, %v317
  %v319 = vmul.f32 %v313, %v318
  %v320 = vadd.f32 %v310, %v319
  %321 = vset.pattern.permute.xlu0 4
  %322 = vperm.xlu0 %321, %v273
  %v323 = vpop.permute.xlu0 %322
  %v325 = vlaneseq
  %v326 = vshrl.u32 %v325, 7
  %v327 = vsub.s32 4, %v326
  %v328 = vrot.slane %v272, %v327
  %v329 = vmul.f32 %v323, %v328
  %v330 = vadd.f32 %v320, %v329
  %331 = vset.pattern.permute.xlu0 5
  %332 = vperm.xlu0 %331, %v273
  %v333 = vpop.permute.xlu0 %332
  %v335 = vlaneseq
  %v336 = vshrl.u32 %v335, 7
  %v337 = vsub.s32 5, %v336
  %v338 = vrot.slane %v272, %v337
  %v339 = vmul.f32 %v333, %v338
  %v340 = vadd.f32 %v330, %v339
  %341 = vset.pattern.permute.xlu0 6
  %342 = vperm.xlu0 %341, %v273
  %v343 = vpop.permute.xlu0 %342
  %v345 = vlaneseq
  %v346 = vshrl.u32 %v345, 7
  %v347 = vsub.s32 6, %v346
  %v348 = vrot.slane %v272, %v347
  %v349 = vmul.f32 %v343, %v348
  %v350 = vadd.f32 %v340, %v349
  %351 = vset.pattern.permute.xlu0 7
  %352 = vperm.xlu0 %351, %v273
  %v353 = vpop.permute.xlu0 %352
  %v355 = vlaneseq
  %v356 = vshrl.u32 %v355, 7
  %v357 = vsub.s32 7, %v356
  %v358 = vrot.slane %v272, %v357
  %v359 = vmul.f32 %v353, %v358
  %v360 = vadd.f32 %v350, %v359
  %v361 = vmul.f32 %v360, 0.01
  %v362 = vmax.f32 %v360, %v361
  %363 = vst [vmem:[%s9] sm:$0xff] %v362
  // Predicated region
  $region38: #{down_forward.1} parent=0 // pred_check
    _
  $region39: #{down_forward.1} parent=0 // pred_check_branch
    %365 = sbr.rel (0) target = $region41
  $region40: #{down_forward.1} parent=0 // pred_region
    _
  $region41: #{down_forward.1} parent=0 // pred_fallthru
    _
  // Predicated region
  $region42: #{down_forward.1} parent=0 // pred_check
    _
  $region43: #{down_forward.1} parent=0 // pred_check_branch
    %367 = sbr.rel (0) target = $region45
  $region44: #{down_forward.1} parent=0 // pred_region
    _
  $region45: #{down_forward.1} parent=0 // pred_fallthru
    _

</llo_original>
